<compile_context>
chip_gen: v5e
topology: v5e:2x2
jax: 0.10.0
libtpu: 0.0.40
codegen_flags: <defaults>
</compile_context>

<pallas_src>
import functools

import jax
import jax.numpy as jnp
import numpy as np
from jax.experimental import pallas as pl
from jax.experimental.pallas import tpu as pltpu

KERNEL_HW = 5
SIGMA = 1.0
P_BLUR = 0.5


def _gaussian_kernel_1d(ksize: int, sigma: float):
    # kornia get_gaussian_kernel2d == outer(g, g) with g the normalized 1D Gaussian,
    # so the separable 5+5 pass below reproduces the 2D kernel exactly.
    x = np.arange(ksize, dtype=np.float64) - ksize // 2
    g = np.exp(-(x ** 2) / (2.0 * sigma ** 2))
    g = g / g.sum()
    return tuple(float(v) for v in g)


def _blur_select_kernel(mask_ref, x_ref, out_ref, pad_ref, *, w1d, H, W, pad):
    """One batch element (all channels) per grid step.

    mask_ref : SMEM int32[B]         (scalar prefetch) 1 -> blur, 0 -> passthrough
    x_ref    : VMEM (1, C, H, W)     input image (NCHW block)
    out_ref  : VMEM (1, C, H, W)     blurred or copied image
    pad_ref  : VMEM (C, H+2p, W+2p)  f32 scratch holding the reflect-padded image
    """
    b = pl.program_id(0)
    K = len(w1d)

    @pl.when(mask_ref[b] == 0)
    def _passthrough():
        out_ref[...] = x_ref[...]

    @pl.when(mask_ref[b] > 0)
    def _do_blur():
        x = x_ref[0].astype(jnp.float32)                      # (C, H, W)

        # ---- build reflect-padded copy in VMEM (PyTorch / kornia 'reflect') ----
        pad_ref[:, pad:pad + H, pad:pad + W] = x              # interior
        for i in range(1, pad + 1):                           # left / right columns
            pad_ref[:, pad:pad + H, pad - i:pad - i + 1] = x[:, :, i:i + 1]
            pad_ref[:, pad:pad + H, pad + W - 1 + i:pad + W + i] = x[:, :, W - 1 - i:W - i]
        for i in range(1, pad + 1):                           # top / bottom rows (corners too,
            # since we copy already horizontally-padded rows)
            pad_ref[:, pad - i:pad - i + 1, :] = pad_ref[:, pad + i:pad + i + 1, :]
            pad_ref[:, pad + H - 1 + i:pad + H + i, :] = pad_ref[:, pad + H - 1 - i:pad + H - i, :]

        # ---- separable Gaussian: horizontal 5-tap pass over all padded rows ... ----
        acc = w1d[0] * pad_ref[:, :, 0:W]
        for j in range(1, K):
            acc = acc + w1d[j] * pad_ref[:, :, j:j + W]       # (C, H+2p, W)
        # ---- ... then vertical 5-tap pass ----
        out = w1d[0] * acc[:, 0:H, :]
        for i in range(1, K):
            out = out + w1d[i] * acc[:, i:i + H, :]           # (C, H, W)
        out_ref[0] = out.astype(out_ref.dtype)


@functools.partial(jax.jit, static_argnames=("kernel_hw", "sigma"))
def original_gaussian_blur(images, should_blur, kernel_hw=KERNEL_HW, sigma=SIGMA):
    """images: (B, C, H, W); should_blur: (B,) bool -> per-batch blur decision."""
    B, C, H, W = images.shape
    pad = kernel_hw // 2
    w1d = _gaussian_kernel_1d(kernel_hw, sigma)
    mask = should_blur.astype(jnp.int32)

    kernel = functools.partial(_blur_select_kernel, w1d=w1d, H=H, W=W, pad=pad)

    return pl.pallas_call(
        kernel,
        out_shape=jax.ShapeDtypeStruct((B, C, H, W), images.dtype),
        grid_spec=pltpu.PrefetchScalarGridSpec(
            num_scalar_prefetch=1,
            grid=(B,),
            in_specs=[pl.BlockSpec((1, C, H, W), lambda b, m: (b, 0, 0, 0))],
            out_specs=pl.BlockSpec((1, C, H, W), lambda b, m: (b, 0, 0, 0)),
            scratch_shapes=[pltpu.VMEM((C, H + 2 * pad, W + 2 * pad), jnp.float32)],
        ),
        compiler_params=pltpu.CompilerParams(
            dimension_semantics=("parallel",)),
    )(mask, images)


def _reference(images, should_blur, kernel_hw=KERNEL_HW, sigma=SIGMA):
    """Pure-JAX reference: full 25-tap depthwise blur + per-batch select."""
    pad = kernel_hw // 2
    g = np.array(_gaussian_kernel_1d(kernel_hw, sigma), dtype=np.float64)
    k2d = np.outer(g, g)
    H, W = images.shape[2], images.shape[3]
    xpad = jnp.pad(images, ((0, 0), (0, 0), (pad, pad), (pad, pad)), mode="reflect")
    acc = jnp.zeros_like(images)
    for i in range(kernel_hw):
        for j in range(kernel_hw):
            acc = acc + float(k2d[i, j]) * xpad[:, :, i:i + H, j:j + W]
    return jnp.where(should_blur[:, None, None, None], acc, images)


if __name__ == "__main__":
    B, C, H, W = 4, 4, 16, 16
    key = jax.random.PRNGKey(0)
    k_img, k_blur = jax.random.split(key)

    images = jax.random.normal(k_img, (B, C, H, W), dtype=jnp.float32)
    # th.rand(batch_size) < p  ->  per-batch blur decision (RNG done wrapper-side with JAX)
    should_blur = jax.random.uniform(k_blur, (B,)) < P_BLUR

    out = jax.block_until_ready(original_gaussian_blur(images, should_blur))
    assert out.shape == (B, C, H, W) and out.dtype == images.dtype
    ref = jax.block_until_ready(_reference(images, should_blur))
    np.testing.assert_allclose(np.asarray(out), np.asarray(ref), rtol=1e-5, atol=1e-5)

    # Deterministically exercise both branches (blur and passthrough).
    forced = jnp.array([True, False, True, False])
    out2 = jax.block_until_ready(original_gaussian_blur(images, forced))
    ref2 = jax.block_until_ready(_reference(images, forced))
    np.testing.assert_allclose(np.asarray(out2), np.asarray(ref2), rtol=1e-5, atol=1e-5)

    print("KERNEL_OK")
</pallas_src>

<mosaic_0001>
module attributes {stable_mosaic.version = 11 : i64} {
  func.func @_blur_select_kernel(%arg0: i32, %arg1: memref<4xi32, #tpu.memory_space<smem>>, %arg2: memref<1x4x16x16xf32, #tpu.memory_space<vmem>>, %arg3: memref<1x4x16x16xf32, #tpu.memory_space<vmem>>, %arg4: memref<4x20x20xf32, #tpu.memory_space<vmem>>) attributes {dimension_semantics = [#tpu.dimension_semantics<parallel>], iteration_bounds = array<i64: 4>, scalar_prefetch = 1 : i64, scratch_operands = 1 : i64, tpu.core_type = #tpu.core_type<tc>, window_params = [{transform_indices = @transform_0, window_bounds = array<i64: 1, 4, 16, 16>}, {transform_indices = @transform_1, window_bounds = array<i64: 1, 4, 16, 16>}]} {
    %0 = arith.index_cast %arg0 : i32 to index
    %1 = memref.load %arg1[%0] : memref<4xi32, #tpu.memory_space<smem>>
    %c0_i32 = arith.constant 0 : i32
    %2 = arith.cmpi eq, %1, %c0_i32 : i32
    %3 = arith.extui %2 : i1 to i32
    %c0_i32_0 = arith.constant 0 : i32
    %4 = arith.cmpi ne, %3, %c0_i32_0 : i32
    scf.if %4 {
      %c0 = arith.constant 0 : index
      %c0_3 = arith.constant 0 : index
      %c0_4 = arith.constant 0 : index
      %c0_5 = arith.constant 0 : index
      %10 = vector.load %arg2[%c0, %c0_3, %c0_4, %c0_5] : memref<1x4x16x16xf32, #tpu.memory_space<vmem>>, vector<1x4x16x16xf32>
      %c0_6 = arith.constant 0 : index
      %c0_7 = arith.constant 0 : index
      %c0_8 = arith.constant 0 : index
      %c0_9 = arith.constant 0 : index
      %11 = vector.load %arg3[%c0_6, %c0_7, %c0_8, %c0_9] : memref<1x4x16x16xf32, #tpu.memory_space<vmem>>, vector<1x4x16x16xf32>
      tpu.vector_store %arg3[%c0_6, %c0_7, %c0_8, %c0_9], %10 {strides = array<i32>} : memref<1x4x16x16xf32, #tpu.memory_space<vmem>>, vector<1x4x16x16xf32>,
    } else {
    }
    %5 = arith.index_cast %arg0 : i32 to index
    %6 = memref.load %arg1[%5] : memref<4xi32, #tpu.memory_space<smem>>
    %c0_i32_1 = arith.constant 0 : i32
    %7 = arith.cmpi sgt, %6, %c0_i32_1 : i32
    %8 = arith.extui %7 : i1 to i32
    %c0_i32_2 = arith.constant 0 : i32
    %9 = arith.cmpi ne, %8, %c0_i32_2 : i32
    scf.if %9 {
      %c0 = arith.constant 0 : index
      %c0_3 = arith.constant 0 : index
      %c0_4 = arith.constant 0 : index
      %c0_5 = arith.constant 0 : index
      %10 = vector.load %arg2[%c0, %c0_3, %c0_4, %c0_5] : memref<1x4x16x16xf32, #tpu.memory_space<vmem>>, vector<1x4x16x16xf32>
      %11 = vector.shape_cast %10 : vector<1x4x16x16xf32> to vector<4x16x16xf32>
      %c0_6 = arith.constant 0 : index
      %c2 = arith.constant 2 : index
      %c2_7 = arith.constant 2 : index
      %12 = vector.load %arg4[%c0_6, %c2, %c2_7] : memref<4x20x20xf32, #tpu.memory_space<vmem>>, vector<4x16x16xf32>
      tpu.vector_store %arg4[%c0_6, %c2, %c2_7], %11 {strides = array<i32>} : memref<4x20x20xf32, #tpu.memory_space<vmem>>, vector<4x16x16xf32>,
      %13 = vector.extract_strided_slice %11 {offsets = [0, 0, 1], sizes = [4, 16, 1], strides = [1, 1, 1]} : vector<4x16x16xf32> to vector<4x16x1xf32>
      %c0_8 = arith.constant 0 : index
      %c2_9 = arith.constant 2 : index
      %c1 = arith.constant 1 : index
      %14 = vector.load %arg4[%c0_8, %c2_9, %c1] : memref<4x20x20xf32, #tpu.memory_space<vmem>>, vector<4x16x1xf32>
      tpu.vector_store %arg4[%c0_8, %c2_9, %c1], %13 {strides = array<i32>} : memref<4x20x20xf32, #tpu.memory_space<vmem>>, vector<4x16x1xf32>,
      %15 = vector.extract_strided_slice %11 {offsets = [0, 0, 14], sizes = [4, 16, 1], strides = [1, 1, 1]} : vector<4x16x16xf32> to vector<4x16x1xf32>
      %c0_10 = arith.constant 0 : index
      %c2_11 = arith.constant 2 : index
      %c18 = arith.constant 18 : index
      %16 = vector.load %arg4[%c0_10, %c2_11, %c18] : memref<4x20x20xf32, #tpu.memory_space<vmem>>, vector<4x16x1xf32>
      tpu.vector_store %arg4[%c0_10, %c2_11, %c18], %15 {strides = array<i32>} : memref<4x20x20xf32, #tpu.memory_space<vmem>>, vector<4x16x1xf32>,
      %17 = vector.extract_strided_slice %11 {offsets = [0, 0, 2], sizes = [4, 16, 1], strides = [1, 1, 1]} : vector<4x16x16xf32> to vector<4x16x1xf32>
      %c0_12 = arith.constant 0 : index
      %c2_13 = arith.constant 2 : index
      %c0_14 = arith.constant 0 : index
      %18 = vector.load %arg4[%c0_12, %c2_13, %c0_14] : memref<4x20x20xf32, #tpu.memory_space<vmem>>, vector<4x16x1xf32>
      tpu.vector_store %arg4[%c0_12, %c2_13, %c0_14], %17 {strides = array<i32>} : memref<4x20x20xf32, #tpu.memory_space<vmem>>, vector<4x16x1xf32>,
      %19 = vector.extract_strided_slice %11 {offsets = [0, 0, 13], sizes = [4, 16, 1], strides = [1, 1, 1]} : vector<4x16x16xf32> to vector<4x16x1xf32>
      %c0_15 = arith.constant 0 : index
      %c2_16 = arith.constant 2 : index
      %c19 = arith.constant 19 : index
      %20 = vector.load %arg4[%c0_15, %c2_16, %c19] : memref<4x20x20xf32, #tpu.memory_space<vmem>>, vector<4x16x1xf32>
      tpu.vector_store %arg4[%c0_15, %c2_16, %c19], %19 {strides = array<i32>} : memref<4x20x20xf32, #tpu.memory_space<vmem>>, vector<4x16x1xf32>,
      %c0_17 = arith.constant 0 : index
      %c3 = arith.constant 3 : index
      %c0_18 = arith.constant 0 : index
      %21 = vector.load %arg4[%c0_17, %c3, %c0_18] : memref<4x20x20xf32, #tpu.memory_space<vmem>>, vector<4x1x20xf32>
      %c0_19 = arith.constant 0 : index
      %c1_20 = arith.constant 1 : index
      %c0_21 = arith.constant 0 : index
      %22 = vector.load %arg4[%c0_19, %c1_20, %c0_21] : memref<4x20x20xf32, #tpu.memory_space<vmem>>, vector<4x1x20xf32>
      tpu.vector_store %arg4[%c0_19, %c1_20, %c0_21], %21 {strides = array<i32>} : memref<4x20x20xf32, #tpu.memory_space<vmem>>, vector<4x1x20xf32>,
      %c0_22 = arith.constant 0 : index
      %c16 = arith.constant 16 : index
      %c0_23 = arith.constant 0 : index
      %23 = vector.load %arg4[%c0_22, %c16, %c0_23] : memref<4x20x20xf32, #tpu.memory_space<vmem>>, vector<4x1x20xf32>
      %c0_24 = arith.constant 0 : index
      %c18_25 = arith.constant 18 : index
      %c0_26 = arith.constant 0 : index
      %24 = vector.load %arg4[%c0_24, %c18_25, %c0_26] : memref<4x20x20xf32, #tpu.memory_space<vmem>>, vector<4x1x20xf32>
      tpu.vector_store %arg4[%c0_24, %c18_25, %c0_26], %23 {strides = array<i32>} : memref<4x20x20xf32, #tpu.memory_space<vmem>>, vector<4x1x20xf32>,
      %c0_27 = arith.constant 0 : index
      %c4 = arith.constant 4 : index
      %c0_28 = arith.constant 0 : index
      %25 = vector.load %arg4[%c0_27, %c4, %c0_28] : memref<4x20x20xf32, #tpu.memory_space<vmem>>, vector<4x1x20xf32>
      %c0_29 = arith.constant 0 : index
      %c0_30 = arith.constant 0 : index
      %c0_31 = arith.constant 0 : index
      %26 = vector.load %arg4[%c0_29, %c0_30, %c0_31] : memref<4x20x20xf32, #tpu.memory_space<vmem>>, vector<4x1x20xf32>
      tpu.vector_store %arg4[%c0_29, %c0_30, %c0_31], %25 {strides = array<i32>} : memref<4x20x20xf32, #tpu.memory_space<vmem>>, vector<4x1x20xf32>,
      %c0_32 = arith.constant 0 : index
      %c15 = arith.constant 15 : index
      %c0_33 = arith.constant 0 : index
      %27 = vector.load %arg4[%c0_32, %c15, %c0_33] : memref<4x20x20xf32, #tpu.memory_space<vmem>>, vector<4x1x20xf32>
      %c0_34 = arith.constant 0 : index
      %c19_35 = arith.constant 19 : index
      %c0_36 = arith.constant 0 : index
      %28 = vector.load %arg4[%c0_34, %c19_35, %c0_36] : memref<4x20x20xf32, #tpu.memory_space<vmem>>, vector<4x1x20xf32>
      tpu.vector_store %arg4[%c0_34, %c19_35, %c0_36], %27 {strides = array<i32>} : memref<4x20x20xf32, #tpu.memory_space<vmem>>, vector<4x1x20xf32>,
      %c0_37 = arith.constant 0 : index
      %c0_38 = arith.constant 0 : index
      %c0_39 = arith.constant 0 : index
      %29 = vector.load %arg4[%c0_37, %c0_38, %c0_39] : memref<4x20x20xf32, #tpu.memory_space<vmem>>, vector<4x20x16xf32>
      %cst = arith.constant 0.054488685 : f32
      %30 = vector.broadcast %cst : f32 to vector<4x20x16xf32>
      %31 = arith.mulf %30, %29 : vector<4x20x16xf32>
      %c0_40 = arith.constant 0 : index
      %c0_41 = arith.constant 0 : index
      %c1_42 = arith.constant 1 : index
      %32 = vector.load %arg4[%c0_40, %c0_41, %c1_42] : memref<4x20x20xf32, #tpu.memory_space<vmem>>, vector<4x20x16xf32>
      %cst_43 = arith.constant 0.244201347 : f32
      %33 = vector.broadcast %cst_43 : f32 to vector<4x20x16xf32>
      %34 = arith.mulf %33, %32 : vector<4x20x16xf32>
      %35 = arith.addf %31, %34 : vector<4x20x16xf32>
      %c0_44 = arith.constant 0 : index
      %c0_45 = arith.constant 0 : index
      %c2_46 = arith.constant 2 : index
      %36 = vector.load %arg4[%c0_44, %c0_45, %c2_46] : memref<4x20x20xf32, #tpu.memory_space<vmem>>, vector<4x20x16xf32>
      %cst_47 = arith.constant 0.402619958 : f32
      %37 = vector.broadcast %cst_47 : f32 to vector<4x20x16xf32>
      %38 = arith.mulf %37, %36 : vector<4x20x16xf32>
      %39 = arith.addf %35, %38 : vector<4x20x16xf32>
      %c0_48 = arith.constant 0 : index
      %c0_49 = arith.constant 0 : index
      %c3_50 = arith.constant 3 : index
      %40 = vector.load %arg4[%c0_48, %c0_49, %c3_50] : memref<4x20x20xf32, #tpu.memory_space<vmem>>, vector<4x20x16xf32>
      %cst_51 = arith.constant 0.244201347 : f32
      %41 = vector.broadcast %cst_51 : f32 to vector<4x20x16xf32>
      %42 = arith.mulf %41, %40 : vector<4x20x16xf32>
      %43 = arith.addf %39, %42 : vector<4x20x16xf32>
      %c0_52 = arith.constant 0 : index
      %c0_53 = arith.constant 0 : index
      %c4_54 = arith.constant 4 : index
      %44 = vector.load %arg4[%c0_52, %c0_53, %c4_54] : memref<4x20x20xf32, #tpu.memory_space<vmem>>, vector<4x20x16xf32>
      %cst_55 = arith.constant 0.054488685 : f32
      %45 = vector.broadcast %cst_55 : f32 to vector<4x20x16xf32>
      %46 = arith.mulf %45, %44 : vector<4x20x16xf32>
      %47 = arith.addf %43, %46 : vector<4x20x16xf32>
      %48 = vector.extract_strided_slice %47 {offsets = [0, 0, 0], sizes = [4, 16, 16], strides = [1, 1, 1]} : vector<4x20x16xf32> to vector<4x16x16xf32>
      %cst_56 = arith.constant 0.054488685 : f32
      %49 = vector.broadcast %cst_56 : f32 to vector<4x16x16xf32>
      %50 = arith.mulf %49, %48 : vector<4x16x16xf32>
      %51 = vector.extract_strided_slice %47 {offsets = [0, 1, 0], sizes = [4, 16, 16], strides = [1, 1, 1]} : vector<4x20x16xf32> to vector<4x16x16xf32>
      %cst_57 = arith.constant 0.244201347 : f32
      %52 = vector.broadcast %cst_57 : f32 to vector<4x16x16xf32>
      %53 = arith.mulf %52, %51 : vector<4x16x16xf32>
      %54 = arith.addf %50, %53 : vector<4x16x16xf32>
      %55 = vector.extract_strided_slice %47 {offsets = [0, 2, 0], sizes = [4, 16, 16], strides = [1, 1, 1]} : vector<4x20x16xf32> to vector<4x16x16xf32>
      %cst_58 = arith.constant 0.402619958 : f32
      %56 = vector.broadcast %cst_58 : f32 to vector<4x16x16xf32>
      %57 = arith.mulf %56, %55 : vector<4x16x16xf32>
      %58 = arith.addf %54, %57 : vector<4x16x16xf32>
      %59 = vector.extract_strided_slice %47 {offsets = [0, 3, 0], sizes = [4, 16, 16], strides = [1, 1, 1]} : vector<4x20x16xf32> to vector<4x16x16xf32>
      %cst_59 = arith.constant 0.244201347 : f32
      %60 = vector.broadcast %cst_59 : f32 to vector<4x16x16xf32>
      %61 = arith.mulf %60, %59 : vector<4x16x16xf32>
      %62 = arith.addf %58, %61 : vector<4x16x16xf32>
      %63 = vector.extract_strided_slice %47 {offsets = [0, 4, 0], sizes = [4, 16, 16], strides = [1, 1, 1]} : vector<4x20x16xf32> to vector<4x16x16xf32>
      %cst_60 = arith.constant 0.054488685 : f32
      %64 = vector.broadcast %cst_60 : f32 to vector<4x16x16xf32>
      %65 = arith.mulf %64, %63 : vector<4x16x16xf32>
      %66 = arith.addf %62, %65 : vector<4x16x16xf32>
      %c0_61 = arith.constant 0 : index
      %c0_62 = arith.constant 0 : index
      %c0_63 = arith.constant 0 : index
      %c0_64 = arith.constant 0 : index
      %67 = vector.load %arg3[%c0_61, %c0_62, %c0_63, %c0_64] : memref<1x4x16x16xf32, #tpu.memory_space<vmem>>, vector<1x4x16x16xf32>
      %68 = vector.shape_cast %67 : vector<1x4x16x16xf32> to vector<4x16x16xf32>
      %69 = vector.shape_cast %66 : vector<4x16x16xf32> to vector<1x4x16x16xf32>
      tpu.vector_store %arg3[%c0_61, %c0_62, %c0_63, %c0_64], %69 {strides = array<i32>} : memref<1x4x16x16xf32, #tpu.memory_space<vmem>>, vector<1x4x16x16xf32>,
    } else {
    }
    return
  }
  func.func @transform_0(%arg0: i32, %arg1: memref<4xi32, #tpu.memory_space<smem>>) -> (i32, i32, i32, i32) {
    %c0_i32 = arith.constant 0 : i32
    %c0_i32_0 = arith.constant 0 : i32
    %c0_i32_1 = arith.constant 0 : i32
    %c0_i32_2 = arith.constant 0 : i32
    return %arg0, %c0_i32, %c0_i32_0, %c0_i32_1 : i32, i32, i32, i32
  }
  func.func @transform_1(%arg0: i32, %arg1: memref<4xi32, #tpu.memory_space<smem>>) -> (i32, i32, i32, i32) {
    %c0_i32 = arith.constant 0 : i32
    %c0_i32_0 = arith.constant 0 : i32
    %c0_i32_1 = arith.constant 0 : i32
    %c0_i32_2 = arith.constant 0 : i32
    return %arg0, %c0_i32, %c0_i32_0, %c0_i32_1 : i32, i32, i32, i32
  }
}

</mosaic_0001>

<llo_original>
// kernel: original_gaussian_blur.1
$region0: #{original_gaussian_blur.1}
  #allocation0 [shape = 'u32[]', space=smem, size = 0x4, offset = 0x4, fixed_abs, tag = 'smem constant byte address 0x4 - core index']
  #allocation1 [shape = 'u32[72,128]{1,0:T(1,128)}', space=vmem, size = 0x9000, scoped, tag = 'internal scratch']
  #allocation2 [shape = 'f32[4,20,20]{2,1,0:T(8,128)}', space=vmem, size = 0xc000, scoped, tag = 'scratch operand']
  #allocation3 [shape = 's32[1]{0}', space=sflag, size = 0x4, scoped, tag = 'scoped memory for original_gaussian_blur.1']
  #allocation4 [shape = 'u8[512]{0}', space=smem, size = 0x200, scoped, tag = 'prefetched SMEM operand 0']
  %s0 = inlined_call_operand.vmem [shape: s32[4], index: 0, kind: input, shape index: {}]
  %s1 = inlined_call_operand.hbm [shape: f32[4,4,16,16], index: 1, kind: input, shape index: {}]
  %s2 = inlined_call_operand.hbm [shape: f32[4,4,16,16], index: 2, kind: output, shape index: {}]
  %s3 = sld [smem:[#allocation0]]
  $region49: #{original_gaussian_blur.1} parent=0
    _
  %s5 = ssub.s32 1, %s3
  %s6 = scalar_select 0, %s5, %s3
  %s8 = sshll.u32 %s0, 4
  %s9 = int_to_ptr.vmem [resolvable:$true] %s8
  %11 = dma.vmem_to_smem %s9, 16, [#allocation4], [#allocation3]
  %13 = dma.done [#allocation3], 16
  %14 = sfence
  $region1: #{original_gaussian_blur.1} parent=0
    #allocation5 [shape = 'u8[65536]{0}', space=vmem, size = 0x10000, scoped, tag = 'input window, operand 1']
    #allocation6 [shape = 's32[2]{0}', space=sflag, size = 0x8, scoped, tag = 'scoped memory for original_gaussian_blur.1']
    #allocation7 [shape = 's32[2]{0}', space=sflag, size = 0x8, scoped, tag = 'scoped memory for original_gaussian_blur.1']
    #allocation8 [shape = 'u8[65536]{0}', space=vmem, size = 0x10000, scoped, tag = 'output window, operand 0']
    %15 = vsyncpa [#allocation6], 0
    %s16 = scalar_lea.sflag [#allocation6], 1
    %17 = vsyncpa %s16, 0
    %18 = vsyncpa [#allocation7], 0
    %s19 = scalar_lea.sflag [#allocation7], 1
    %20 = vsyncpa %s19, 0
    loop: start=0, step=1, limit=6
    $region2: #{original_gaussian_blur.1} parent=1 // loop_pre_header
      _
    $region3: #{original_gaussian_blur.1} parent=1 // loop_header
      %s22 = sphi 0, %s26
      %p23 = scmp.ge.s32.totalorder %s22, 6
      %s32 = sphi 0, %s34
      %s35 = sphi 0, %s32
      %s36 = sphi 0, %s35
      %s52 = sphi 0, %s36
      %s58 = sphi 0, %s60
      %s61 = sphi 0, %s58
      %s62 = sphi 0, %s61
      %s78 = sphi 0, %s62
    $region4: #{original_gaussian_blur.1} parent=1 // loop_header_branch
      %25 = sbr.rel (%p23) target = $region8
    $region5: #{original_gaussian_blur.1} parent=1 // loop_body
      %s27 = ssub.s32 %s22, 1
      %s28 = ssub.s32 %s22, 2
      %s29 = sadd.s32 %s22, 1
      %s30 = ssub.s32 %s22, %s29
      %p31 = scmp.eq.s32.totalorder %s30, 0
      %s33 = sadd.s32 %s32, 1
      %s34 = scalar_select %p31, %s32, %s33
      %p37 = pneg %p31
      %p38 = scmp.eq.s32.totalorder %s22, 3
      %p39 = por %p37, %p38
      %p40 = scmp.ne.s32.totalorder %s32, %s35
      %p41 = scmp.eq.s32.totalorder %s22, 0
      %p42 = por %p40, %p41
      %p43 = scmp.ne.s32.totalorder %s32, %s35
      %p44 = scmp.eq.s32.totalorder %s27, 3
      %p45 = por %p43, %p44
      %p46 = scmp.ne.s32.totalorder %s35, %s36
      %p47 = scmp.eq.s32.totalorder %s27, 0
      %p48 = por %p46, %p47
      %p49 = scmp.ne.s32.totalorder %s35, %s36
      %p50 = scmp.eq.s32.totalorder %s28, 3
      %p51 = por %p49, %p50
      %p53 = scmp.ne.s32.totalorder %s36, %s52
      %p54 = scmp.eq.s32.totalorder %s28, 0
      %p55 = por %p53, %p54
      %s56 = ssub.s32 %s22, %s29
      %p57 = scmp.eq.s32.totalorder %s56, 0
      %s59 = sadd.s32 %s58, 1
      %s60 = scalar_select %p57, %s58, %s59
      %p63 = pneg %p57
      %p64 = scmp.eq.s32.totalorder %s22, 3
      %p65 = por %p63, %p64
      %p66 = scmp.ne.s32.totalorder %s58, %s61
      %p67 = scmp.eq.s32.totalorder %s22, 0
      %p68 = por %p66, %p67
      %p69 = scmp.ne.s32.totalorder %s58, %s61
      %p70 = scmp.eq.s32.totalorder %s27, 3
      %p71 = por %p69, %p70
      %p72 = scmp.ne.s32.totalorder %s61, %s62
      %p73 = scmp.eq.s32.totalorder %s27, 0
      %p74 = por %p72, %p73
      %p75 = scmp.ne.s32.totalorder %s61, %s62
      %p76 = scmp.eq.s32.totalorder %s28, 3
      %p77 = por %p75, %p76
      %p79 = scmp.ne.s32.totalorder %s62, %s78
      %p80 = scmp.eq.s32.totalorder %s28, 0
      %p81 = por %p79, %p80
      %p82 = scmp.le.s32.totalorder 1, %s22
      %p83 = scmp.lt.s32.totalorder %s22, 5
      %p84 = pnand %p82, %p83
      %p85 = pneg %p84
      // Predicated region
      $region9: #{original_gaussian_blur.1} parent=5 // pred_check
        _
      $region10: #{original_gaussian_blur.1} parent=5 // pred_check_branch
        %87 = sbr.rel (%p84) target = $region12
      $region11: #{original_gaussian_blur.1} parent=5 // pred_region
        %s88 = ssub.s32 %s22, 1
      $region12: #{original_gaussian_blur.1} parent=5 // pred_fallthru
        _
      %p89 = scmp.lt.s32.totalorder %s22, 4
      // Predicated region
      $region13: #{original_gaussian_blur.1} parent=5 // pred_check
        %p90 = pneg %p89
      $region14: #{original_gaussian_blur.1} parent=5 // pred_check_branch
        %92 = sbr.rel (%p90) target = $region16
      $region15: #{original_gaussian_blur.1} parent=5 // pred_region
        // Predicated region
        $region17: #{original_gaussian_blur.1} parent=15 // pred_check
          %p93 = pneg %p42
        $region18: #{original_gaussian_blur.1} parent=15 // pred_check_branch
          %95 = sbr.rel (%p93) target = $region20
        $region19: #{original_gaussian_blur.1} parent=15 // pred_region
          %s96 = sand.u32 %s32, 1
          %s97 = scalar_lea.sflag [#allocation6], %s96
          %s98 = sand.u32 %s32, 1
          %s99 = smul.addr %s98, 64
          %s100 = scalar_lea.vmem [#allocation5], %s99
          %102 = vsyncadd %s97, 0
          %s103 = smul.addr %s22, 8
          %s104 = smul.addr %s103, 8
          %s105 = scalar_lea.hbm %s1, %s104
          %s106 = sshll.u32 %s105, 4
          %s107 = int_to_ptr.hbm [resolvable:$true] %s106
          %s108 = sshll.u32 %s100, 4
          %s109 = int_to_ptr.vmem [resolvable:$true] %s108
          %114 = dma.hbm_to_vmem [thread:$0]  %s107, 1024, %s109, %s97, 128, 128, 8
        $region20: #{original_gaussian_blur.1} parent=15 // pred_fallthru
          _
      $region16: #{original_gaussian_blur.1} parent=5 // pred_fallthru
        _
      %p115 = scmp.le.s32.totalorder 1, %s22
      %p116 = scmp.lt.s32.totalorder %s22, 5
      %p117 = pnand %p115, %p116
      %p118 = pneg %p117
      // Predicated region
      $region21: #{original_gaussian_blur.1} parent=5 // pred_check
        _
      $region22: #{original_gaussian_blur.1} parent=5 // pred_check_branch
        %120 = sbr.rel (%p117) target = $region24
      $region23: #{original_gaussian_blur.1} parent=5 // pred_region
        %s121 = ssub.s32 %s22, 1
        %s122 = sand.u32 %s35, 1
        %s123 = scalar_lea.sflag [#allocation6], %s122
        %s124 = sand.u32 %s35, 1
        %s125 = smul.addr %s124, 64
        %s126 = scalar_lea.vmem [#allocation5], %s125
        // Predicated region
        $region25: #{original_gaussian_blur.1} parent=23 // pred_check
          %p127 = pneg %p48
        $region26: #{original_gaussian_blur.1} parent=23 // pred_check_branch
          %129 = sbr.rel (%p127) target = $region28
        $region27: #{original_gaussian_blur.1} parent=23 // pred_region
          %131 = dma.done %s123, 1024
        $region28: #{original_gaussian_blur.1} parent=23 // pred_fallthru
          _
        %s132 = sand.u32 %s35, 1
        %s133 = scalar_lea.sflag [#allocation6], %s132
        %s134 = sand.u32 %s35, 1
        %s135 = smul.addr %s134, 64
        %s136 = scalar_lea.vmem [#allocation5], %s135
        %p137 = pneg %p48
        %p138 = pneg %p45
        %p139 = pneg %p74
        %p140 = pneg %p71
        %s141 = sand.u32 %s61, 1
        %s142 = scalar_lea.sflag [#allocation7], %s141
        %s143 = sand.u32 %s61, 1
        %s144 = smul.addr %s143, 64
        %s145 = scalar_lea.vmem [#allocation8], %s144
        %s146 = sld [smem:[#allocation4 + %s27]]
        %p147 = scmp.eq.s32.totalorder %s146, 0
        // Predicated region
        $region29: #{original_gaussian_blur.1} parent=23 // pred_check
          %p148 = pneg %p147
        $region30: #{original_gaussian_blur.1} parent=23 // pred_check_branch
          %150 = sbr.rel (%p148) target = $region32
        $region31: #{original_gaussian_blur.1} parent=23 // pred_region
          %v151 = vld [vmem:[%s126] sm:$0xff]
          %v152 = vld [vmem:[%s126 + $0x8] sm:$0xff]
          %v153 = vld [vmem:[%s126 + $0x10] sm:$0xff]
          %v154 = vld [vmem:[%s126 + $0x18] sm:$0xff]
          %v155 = vld [vmem:[%s126 + $0x20] sm:$0xff]
          %v156 = vld [vmem:[%s126 + $0x28] sm:$0xff]
          %v157 = vld [vmem:[%s126 + $0x30] sm:$0xff]
          %v158 = vld [vmem:[%s126 + $0x38] sm:$0xff]
          %vm159 = vcmask 130048
          %160 = vst.msk [vmem:[%s145] sm:$0xff] %vm159, %v151
          %161 = vst.msk [vmem:[%s145 + $0x8] sm:$0xff] %vm159, %v152
          %162 = vst.msk [vmem:[%s145 + $0x10] sm:$0xff] %vm159, %v153
          %163 = vst.msk [vmem:[%s145 + $0x18] sm:$0xff] %vm159, %v154
          %164 = vst.msk [vmem:[%s145 + $0x20] sm:$0xff] %vm159, %v155
          %165 = vst.msk [vmem:[%s145 + $0x28] sm:$0xff] %vm159, %v156
          %166 = vst.msk [vmem:[%s145 + $0x30] sm:$0xff] %vm159, %v157
          %167 = vst.msk [vmem:[%s145 + $0x38] sm:$0xff] %vm159, %v158
        $region32: #{original_gaussian_blur.1} parent=23 // pred_fallthru
          _
        %s168 = sld [smem:[#allocation4 + %s27]]
        %p169 = scmp.gt.s32.totalorder %s168, 0
        // Predicated region
        $region33: #{original_gaussian_blur.1} parent=23 // pred_check
          %p170 = pneg %p169
        $region34: #{original_gaussian_blur.1} parent=23 // pred_check_branch
          %172 = sbr.rel (%p170) target = $region36
        $region35: #{original_gaussian_blur.1} parent=23 // pred_region
          %v173 = vld [vmem:[%s126] sm:$0xff]
          %v174 = vld [vmem:[%s126 + $0x8] sm:$0xff]
          %v175 = vld [vmem:[%s126 + $0x10] sm:$0xff]
          %v176 = vld [vmem:[%s126 + $0x18] sm:$0xff]
          %v177 = vld [vmem:[%s126 + $0x20] sm:$0xff]
          %v178 = vld [vmem:[%s126 + $0x28] sm:$0xff]
          %v179 = vld [vmem:[%s126 + $0x30] sm:$0xff]
          %v180 = vld [vmem:[%s126 + $0x38] sm:$0xff]
          %189 = vrot.lane.b32.xlu0 %v173, 2
          %v190 = vpop.permute.xlu0 %189
          %191 = vrot.lane.b32.xlu0 %v174, 2
          %v192 = vpop.permute.xlu0 %191
          %193 = vrot.lane.b32.xlu0 %v175, 2
          %v194 = vpop.permute.xlu0 %193
          %195 = vrot.lane.b32.xlu0 %v176, 2
          %v196 = vpop.permute.xlu0 %195
          %197 = vrot.lane.b32.xlu0 %v177, 2
          %v198 = vpop.permute.xlu0 %197
          %199 = vrot.lane.b32.xlu0 %v178, 2
          %v200 = vpop.permute.xlu0 %199
          %201 = vrot.lane.b32.xlu0 %v179, 2
          %v202 = vpop.permute.xlu0 %201
          %203 = vrot.lane.b32.xlu0 %v180, 2
          %v204 = vpop.permute.xlu0 %203
          %vm213 = vcmask 146448
          %214 = vst.msk [vmem:[#allocation2 + $0x2] sm:$0xff] %vm213, %v190
          %215 = vst.msk [vmem:[#allocation2 + $0xa] sm:$0xff] %vm213, %v192
          %216 = vst.msk [vmem:[#allocation2 + $0x1a] sm:$0xff] %vm213, %v194
          %217 = vst.msk [vmem:[#allocation2 + $0x22] sm:$0xff] %vm213, %v196
          %218 = vst.msk [vmem:[#allocation2 + $0x32] sm:$0xff] %vm213, %v198
          %219 = vst.msk [vmem:[#allocation2 + $0x3a] sm:$0xff] %vm213, %v200
          %220 = vst.msk [vmem:[#allocation2 + $0x4a] sm:$0xff] %vm213, %v202
          %221 = vst.msk [vmem:[#allocation2 + $0x52] sm:$0xff] %vm213, %v204
          %vm222 = vcmask 15368
          %223 = vst.msk [vmem:[#allocation2 + $0x2] sm:$0xff] %vm222, %v173
          %224 = vst.msk [vmem:[#allocation2 + $0xa] sm:$0xff] %vm222, %v174
          %225 = vst.msk [vmem:[#allocation2 + $0x1a] sm:$0xff] %vm222, %v175
          %226 = vst.msk [vmem:[#allocation2 + $0x22] sm:$0xff] %vm222, %v176
          %227 = vst.msk [vmem:[#allocation2 + $0x32] sm:$0xff] %vm222, %v177
          %228 = vst.msk [vmem:[#allocation2 + $0x3a] sm:$0xff] %vm222, %v178
          %229 = vst.msk [vmem:[#allocation2 + $0x4a] sm:$0xff] %vm222, %v179
          %230 = vst.msk [vmem:[#allocation2 + $0x52] sm:$0xff] %vm222, %v180
          %231 = vrot.lane.b32.xlu0 %v173, 4
          %v232 = vpop.permute.xlu0 %231
          %233 = vrot.lane.b32.xlu0 %v174, 4
          %v234 = vpop.permute.xlu0 %233
          %235 = vrot.lane.b32.xlu0 %v175, 4
          %v236 = vpop.permute.xlu0 %235
          %237 = vrot.lane.b32.xlu0 %v176, 4
          %v238 = vpop.permute.xlu0 %237
          %239 = vrot.lane.b32.xlu0 %v177, 4
          %v240 = vpop.permute.xlu0 %239
          %241 = vrot.lane.b32.xlu0 %v178, 4
          %v242 = vpop.permute.xlu0 %241
          %243 = vrot.lane.b32.xlu0 %v179, 4
          %v244 = vpop.permute.xlu0 %243
          %245 = vrot.lane.b32.xlu0 %v180, 4
          %v246 = vpop.permute.xlu0 %245
          %vm255 = vcmask 154768
          %256 = vst.msk [vmem:[#allocation2 + $0x2] sm:$0xff] %vm255, %v232
          %257 = vst.msk [vmem:[#allocation2 + $0xa] sm:$0xff] %vm255, %v234
          %258 = vst.msk [vmem:[#allocation2 + $0x1a] sm:$0xff] %vm255, %v236
          %259 = vst.msk [vmem:[#allocation2 + $0x22] sm:$0xff] %vm255, %v238
          %260 = vst.msk [vmem:[#allocation2 + $0x32] sm:$0xff] %vm255, %v240
          %261 = vst.msk [vmem:[#allocation2 + $0x3a] sm:$0xff] %vm255, %v242
          %262 = vst.msk [vmem:[#allocation2 + $0x4a] sm:$0xff] %vm255, %v244
          %263 = vst.msk [vmem:[#allocation2 + $0x52] sm:$0xff] %vm255, %v246
          %264 = vrot.lane.b32.xlu0 %v173, 126
          %v265 = vpop.permute.xlu0 %264
          %266 = vrot.lane.b32.xlu0 %v174, 126
          %v267 = vpop.permute.xlu0 %266
          %268 = vrot.lane.b32.xlu0 %v175, 126
          %v269 = vpop.permute.xlu0 %268
          %270 = vrot.lane.b32.xlu0 %v176, 126
          %v271 = vpop.permute.xlu0 %270
          %272 = vrot.lane.b32.xlu0 %v177, 126
          %v273 = vpop.permute.xlu0 %272
          %274 = vrot.lane.b32.xlu0 %v178, 126
          %v275 = vpop.permute.xlu0 %274
          %276 = vrot.lane.b32.xlu0 %v179, 126
          %v277 = vpop.permute.xlu0 %276
          %278 = vrot.lane.b32.xlu0 %v180, 126
          %v279 = vpop.permute.xlu0 %278
          %vm288 = vcmask 7168
          %289 = vst.msk [vmem:[#allocation2 + $0x2] sm:$0xff] %vm288, %v265
          %290 = vst.msk [vmem:[#allocation2 + $0xa] sm:$0xff] %vm288, %v267
          %291 = vst.msk [vmem:[#allocation2 + $0x1a] sm:$0xff] %vm288, %v269
          %292 = vst.msk [vmem:[#allocation2 + $0x22] sm:$0xff] %vm288, %v271
          %293 = vst.msk [vmem:[#allocation2 + $0x32] sm:$0xff] %vm288, %v273
          %294 = vst.msk [vmem:[#allocation2 + $0x3a] sm:$0xff] %vm288, %v275
          %295 = vst.msk [vmem:[#allocation2 + $0x4a] sm:$0xff] %vm288, %v277
          %296 = vst.msk [vmem:[#allocation2 + $0x52] sm:$0xff] %vm288, %v279
          %297 = vrot.lane.b32.xlu0 %v173, 6
          %v298 = vpop.permute.xlu0 %297
          %299 = vrot.lane.b32.xlu0 %v174, 6
          %v300 = vpop.permute.xlu0 %299
          %301 = vrot.lane.b32.xlu0 %v175, 6
          %v302 = vpop.permute.xlu0 %301
          %303 = vrot.lane.b32.xlu0 %v176, 6
          %v304 = vpop.permute.xlu0 %303
          %305 = vrot.lane.b32.xlu0 %v177, 6
          %v306 = vpop.permute.xlu0 %305
          %307 = vrot.lane.b32.xlu0 %v178, 6
          %v308 = vpop.permute.xlu0 %307
          %309 = vrot.lane.b32.xlu0 %v179, 6
          %v310 = vpop.permute.xlu0 %309
          %311 = vrot.lane.b32.xlu0 %v180, 6
          %v312 = vpop.permute.xlu0 %311
          %vm321 = vcmask 162968
          %322 = vst.msk [vmem:[#allocation2 + $0x2] sm:$0xff] %vm321, %v298
          %323 = vst.msk [vmem:[#allocation2 + $0xa] sm:$0xff] %vm321, %v300
          %324 = vst.msk [vmem:[#allocation2 + $0x1a] sm:$0xff] %vm321, %v302
          %325 = vst.msk [vmem:[#allocation2 + $0x22] sm:$0xff] %vm321, %v304
          %326 = vst.msk [vmem:[#allocation2 + $0x32] sm:$0xff] %vm321, %v306
          %327 = vst.msk [vmem:[#allocation2 + $0x3a] sm:$0xff] %vm321, %v308
          %328 = vst.msk [vmem:[#allocation2 + $0x4a] sm:$0xff] %vm321, %v310
          %329 = vst.msk [vmem:[#allocation2 + $0x52] sm:$0xff] %vm321, %v312
          %v330 = vld [vmem:[#allocation2 + $0x3] sm:$0x1]
          %v331 = vld [vmem:[#allocation2 + $0x1b] sm:$0x1]
          %v332 = vld [vmem:[#allocation2 + $0x33] sm:$0x1]
          %v333 = vld [vmem:[#allocation2 + $0x4b] sm:$0x1]
          %vm334 = vcmask 155648
          %335 = vst.msk [vmem:[#allocation2 + $0x1] sm:$0x1] %vm334, %v330
          %336 = vst.msk [vmem:[#allocation2 + $0x19] sm:$0x1] %vm334, %v331
          %337 = vst.msk [vmem:[#allocation2 + $0x31] sm:$0x1] %vm334, %v332
          %338 = vst.msk [vmem:[#allocation2 + $0x49] sm:$0x1] %vm334, %v333
          %v339 = vld [vmem:[#allocation2 + $0x10] sm:$0x1]
          %v340 = vld [vmem:[#allocation2 + $0x28] sm:$0x1]
          %v341 = vld [vmem:[#allocation2 + $0x40] sm:$0x1]
          %v342 = vld [vmem:[#allocation2 + $0x58] sm:$0x1]
          %343 = vst.msk [vmem:[#allocation2 + $0x12] sm:$0x1] %vm334, %v339
          %344 = vst.msk [vmem:[#allocation2 + $0x2a] sm:$0x1] %vm334, %v340
          %345 = vst.msk [vmem:[#allocation2 + $0x42] sm:$0x1] %vm334, %v341
          %346 = vst.msk [vmem:[#allocation2 + $0x5a] sm:$0x1] %vm334, %v342
          %v347 = vld [vmem:[#allocation2 + $0x4] sm:$0x1]
          %v348 = vld [vmem:[#allocation2 + $0x1c] sm:$0x1]
          %v349 = vld [vmem:[#allocation2 + $0x34] sm:$0x1]
          %v350 = vld [vmem:[#allocation2 + $0x4c] sm:$0x1]
          %351 = vst.msk [vmem:[#allocation2] sm:$0x1] %vm334, %v347
          %352 = vst.msk [vmem:[#allocation2 + $0x18] sm:$0x1] %vm334, %v348
          %353 = vst.msk [vmem:[#allocation2 + $0x30] sm:$0x1] %vm334, %v349
          %354 = vst.msk [vmem:[#allocation2 + $0x48] sm:$0x1] %vm334, %v350
          %v355 = vld [vmem:[#allocation2 + $0xf] sm:$0x1]
          %v356 = vld [vmem:[#allocation2 + $0x27] sm:$0x1]
          %v357 = vld [vmem:[#allocation2 + $0x3f] sm:$0x1]
          %v358 = vld [vmem:[#allocation2 + $0x57] sm:$0x1]
          %359 = vst.msk [vmem:[#allocation2 + $0x13] sm:$0x1] %vm334, %v355
          %360 = vst.msk [vmem:[#allocation2 + $0x2b] sm:$0x1] %vm334, %v356
          %361 = vst.msk [vmem:[#allocation2 + $0x43] sm:$0x1] %vm334, %v357
          %362 = vst.msk [vmem:[#allocation2 + $0x5b] sm:$0x1] %vm334, %v358
          %v363 = vld [vmem:[#allocation2] sm:$0xff]
          %v364 = vld [vmem:[#allocation2 + $0x8] sm:$0xff]
          %v365 = vld [vmem:[#allocation2 + $0x10] sm:$0xf]
          %v366 = vld [vmem:[#allocation2 + $0x18] sm:$0xff]
          %v367 = vld [vmem:[#allocation2 + $0x20] sm:$0xff]
          %v368 = vld [vmem:[#allocation2 + $0x28] sm:$0xf]
          %v369 = vld [vmem:[#allocation2 + $0x30] sm:$0xff]
          %v370 = vld [vmem:[#allocation2 + $0x38] sm:$0xff]
          %v371 = vld [vmem:[#allocation2 + $0x40] sm:$0xf]
          %v372 = vld [vmem:[#allocation2 + $0x48] sm:$0xff]
          %v373 = vld [vmem:[#allocation2 + $0x50] sm:$0xff]
          %v374 = vld [vmem:[#allocation2 + $0x58] sm:$0xf]
          %v375 = vmul.f32 %v363, 0.054488685
          %v376 = vmul.f32 %v364, 0.054488685
          %v377 = vmul.f32 %v365, 0.054488685
          %v378 = vmul.f32 %v366, 0.054488685
          %v379 = vmul.f32 %v367, 0.054488685
          %v380 = vmul.f32 %v368, 0.054488685
          %v381 = vmul.f32 %v369, 0.054488685
          %v382 = vmul.f32 %v370, 0.054488685
          %v383 = vmul.f32 %v371, 0.054488685
          %v384 = vmul.f32 %v372, 0.054488685
          %v385 = vmul.f32 %v373, 0.054488685
          %v386 = vmul.f32 %v374, 0.054488685
          %v387 = vmul.f32 %v363, 0.24420135
          %v388 = vmul.f32 %v364, 0.24420135
          %v389 = vmul.f32 %v365, 0.24420135
          %v390 = vmul.f32 %v366, 0.24420135
          %v391 = vmul.f32 %v367, 0.24420135
          %v392 = vmul.f32 %v368, 0.24420135
          %v393 = vmul.f32 %v369, 0.24420135
          %v394 = vmul.f32 %v370, 0.24420135
          %v395 = vmul.f32 %v371, 0.24420135
          %v396 = vmul.f32 %v372, 0.24420135
          %v397 = vmul.f32 %v373, 0.24420135
          %v398 = vmul.f32 %v374, 0.24420135
          %411 = vrot.lane.b32.xlu0 %v387, 127
          %v412 = vpop.permute.xlu0 %411
          %413 = vrot.lane.b32.xlu0 %v388, 127
          %v414 = vpop.permute.xlu0 %413
          %415 = vrot.lane.b32.xlu0 %v389, 127
          %v416 = vpop.permute.xlu0 %415
          %417 = vrot.lane.b32.xlu0 %v390, 127
          %v418 = vpop.permute.xlu0 %417
          %419 = vrot.lane.b32.xlu0 %v391, 127
          %v420 = vpop.permute.xlu0 %419
          %421 = vrot.lane.b32.xlu0 %v392, 127
          %v422 = vpop.permute.xlu0 %421
          %423 = vrot.lane.b32.xlu0 %v393, 127
          %v424 = vpop.permute.xlu0 %423
          %425 = vrot.lane.b32.xlu0 %v394, 127
          %v426 = vpop.permute.xlu0 %425
          %427 = vrot.lane.b32.xlu0 %v395, 127
          %v428 = vpop.permute.xlu0 %427
          %429 = vrot.lane.b32.xlu0 %v396, 127
          %v430 = vpop.permute.xlu0 %429
          %431 = vrot.lane.b32.xlu0 %v397, 127
          %v432 = vpop.permute.xlu0 %431
          %433 = vrot.lane.b32.xlu0 %v398, 127
          %v434 = vpop.permute.xlu0 %433
          %v447 = vadd.f32 %v375, %v412
          %v448 = vadd.f32 %v376, %v414
          %v449 = vadd.f32 %v377, %v416
          %v450 = vadd.f32 %v378, %v418
          %v451 = vadd.f32 %v379, %v420
          %v452 = vadd.f32 %v380, %v422
          %v453 = vadd.f32 %v381, %v424
          %v454 = vadd.f32 %v382, %v426
          %v455 = vadd.f32 %v383, %v428
          %v456 = vadd.f32 %v384, %v430
          %v457 = vadd.f32 %v385, %v432
          %v458 = vadd.f32 %v386, %v434
          %v459 = vmul.f32 %v363, 0.40261996
          %v460 = vmul.f32 %v364, 0.40261996
          %v461 = vmul.f32 %v365, 0.40261996
          %v462 = vmul.f32 %v366, 0.40261996
          %v463 = vmul.f32 %v367, 0.40261996
          %v464 = vmul.f32 %v368, 0.40261996
          %v465 = vmul.f32 %v369, 0.40261996
          %v466 = vmul.f32 %v370, 0.40261996
          %v467 = vmul.f32 %v371, 0.40261996
          %v468 = vmul.f32 %v372, 0.40261996
          %v469 = vmul.f32 %v373, 0.40261996
          %v470 = vmul.f32 %v374, 0.40261996
          %483 = vrot.lane.b32.xlu0 %v459, 126
          %v484 = vpop.permute.xlu0 %483
          %485 = vrot.lane.b32.xlu0 %v460, 126
          %v486 = vpop.permute.xlu0 %485
          %487 = vrot.lane.b32.xlu0 %v461, 126
          %v488 = vpop.permute.xlu0 %487
          %489 = vrot.lane.b32.xlu0 %v462, 126
          %v490 = vpop.permute.xlu0 %489
          %491 = vrot.lane.b32.xlu0 %v463, 126
          %v492 = vpop.permute.xlu0 %491
          %493 = vrot.lane.b32.xlu0 %v464, 126
          %v494 = vpop.permute.xlu0 %493
          %495 = vrot.lane.b32.xlu0 %v465, 126
          %v496 = vpop.permute.xlu0 %495
          %497 = vrot.lane.b32.xlu0 %v466, 126
          %v498 = vpop.permute.xlu0 %497
          %499 = vrot.lane.b32.xlu0 %v467, 126
          %v500 = vpop.permute.xlu0 %499
          %501 = vrot.lane.b32.xlu0 %v468, 126
          %v502 = vpop.permute.xlu0 %501
          %503 = vrot.lane.b32.xlu0 %v469, 126
          %v504 = vpop.permute.xlu0 %503
          %505 = vrot.lane.b32.xlu0 %v470, 126
          %v506 = vpop.permute.xlu0 %505
          %v519 = vadd.f32 %v447, %v484
          %v520 = vadd.f32 %v448, %v486
          %v521 = vadd.f32 %v449, %v488
          %v522 = vadd.f32 %v450, %v490
          %v523 = vadd.f32 %v451, %v492
          %v524 = vadd.f32 %v452, %v494
          %v525 = vadd.f32 %v453, %v496
          %v526 = vadd.f32 %v454, %v498
          %v527 = vadd.f32 %v455, %v500
          %v528 = vadd.f32 %v456, %v502
          %v529 = vadd.f32 %v457, %v504
          %v530 = vadd.f32 %v458, %v506
          %531 = vrot.lane.b32.xlu0 %v387, 125
          %v532 = vpop.permute.xlu0 %531
          %533 = vrot.lane.b32.xlu0 %v388, 125
          %v534 = vpop.permute.xlu0 %533
          %535 = vrot.lane.b32.xlu0 %v389, 125
          %v536 = vpop.permute.xlu0 %535
          %537 = vrot.lane.b32.xlu0 %v390, 125
          %v538 = vpop.permute.xlu0 %537
          %539 = vrot.lane.b32.xlu0 %v391, 125
          %v540 = vpop.permute.xlu0 %539
          %541 = vrot.lane.b32.xlu0 %v392, 125
          %v542 = vpop.permute.xlu0 %541
          %543 = vrot.lane.b32.xlu0 %v393, 125
          %v544 = vpop.permute.xlu0 %543
          %545 = vrot.lane.b32.xlu0 %v394, 125
          %v546 = vpop.permute.xlu0 %545
          %547 = vrot.lane.b32.xlu0 %v395, 125
          %v548 = vpop.permute.xlu0 %547
          %549 = vrot.lane.b32.xlu0 %v396, 125
          %v550 = vpop.permute.xlu0 %549
          %551 = vrot.lane.b32.xlu0 %v397, 125
          %v552 = vpop.permute.xlu0 %551
          %553 = vrot.lane.b32.xlu0 %v398, 125
          %v554 = vpop.permute.xlu0 %553
          %v567 = vadd.f32 %v519, %v532
          %v568 = vadd.f32 %v520, %v534
          %v569 = vadd.f32 %v521, %v536
          %v570 = vadd.f32 %v522, %v538
          %v571 = vadd.f32 %v523, %v540
          %v572 = vadd.f32 %v524, %v542
          %v573 = vadd.f32 %v525, %v544
          %v574 = vadd.f32 %v526, %v546
          %v575 = vadd.f32 %v527, %v548
          %v576 = vadd.f32 %v528, %v550
          %v577 = vadd.f32 %v529, %v552
          %v578 = vadd.f32 %v530, %v554
          %591 = vrot.lane.b32.xlu0 %v375, 124
          %v592 = vpop.permute.xlu0 %591
          %593 = vrot.lane.b32.xlu0 %v376, 124
          %v594 = vpop.permute.xlu0 %593
          %595 = vrot.lane.b32.xlu0 %v377, 124
          %v596 = vpop.permute.xlu0 %595
          %597 = vrot.lane.b32.xlu0 %v378, 124
          %v598 = vpop.permute.xlu0 %597
          %599 = vrot.lane.b32.xlu0 %v379, 124
          %v600 = vpop.permute.xlu0 %599
          %601 = vrot.lane.b32.xlu0 %v380, 124
          %v602 = vpop.permute.xlu0 %601
          %603 = vrot.lane.b32.xlu0 %v381, 124
          %v604 = vpop.permute.xlu0 %603
          %605 = vrot.lane.b32.xlu0 %v382, 124
          %v606 = vpop.permute.xlu0 %605
          %607 = vrot.lane.b32.xlu0 %v383, 124
          %v608 = vpop.permute.xlu0 %607
          %609 = vrot.lane.b32.xlu0 %v384, 124
          %v610 = vpop.permute.xlu0 %609
          %611 = vrot.lane.b32.xlu0 %v385, 124
          %v612 = vpop.permute.xlu0 %611
          %613 = vrot.lane.b32.xlu0 %v386, 124
          %v614 = vpop.permute.xlu0 %613
          %v627 = vadd.f32 %v567, %v592
          %v628 = vadd.f32 %v568, %v594
          %v629 = vadd.f32 %v569, %v596
          %v630 = vadd.f32 %v570, %v598
          %v631 = vadd.f32 %v571, %v600
          %v632 = vadd.f32 %v572, %v602
          %v633 = vadd.f32 %v573, %v604
          %v634 = vadd.f32 %v574, %v606
          %v635 = vadd.f32 %v575, %v608
          %v636 = vadd.f32 %v576, %v610
          %v637 = vadd.f32 %v577, %v612
          %v638 = vadd.f32 %v578, %v614
          %v639 = vmul.f32 %v627, 0.054488685
          %v640 = vmul.f32 %v628, 0.054488685
          %v641 = vmul.f32 %v630, 0.054488685
          %v642 = vmul.f32 %v631, 0.054488685
          %v643 = vmul.f32 %v633, 0.054488685
          %v644 = vmul.f32 %v634, 0.054488685
          %v645 = vmul.f32 %v636, 0.054488685
          %v646 = vmul.f32 %v637, 0.054488685
          %v647 = vmul.f32 %v627, 0.24420135
          %v648 = vmul.f32 %v628, 0.24420135
          %v649 = vmul.f32 %v629, 0.24420135
          %v650 = vmul.f32 %v630, 0.24420135
          %v651 = vmul.f32 %v631, 0.24420135
          %v652 = vmul.f32 %v632, 0.24420135
          %v653 = vmul.f32 %v633, 0.24420135
          %v654 = vmul.f32 %v634, 0.24420135
          %v655 = vmul.f32 %v635, 0.24420135
          %v656 = vmul.f32 %v636, 0.24420135
          %v657 = vmul.f32 %v637, 0.24420135
          %v658 = vmul.f32 %v638, 0.24420135
          %vm671 = vcmask 1046528
          %v672 = vrot.slane %v647, 1
          %v673 = vrot.slane %v648, 1
          %v674 = vsel %vm671, %v672, %v673
          %v675 = vrot.slane %v649, 1
          %v676 = vsel %vm671, %v673, %v675
          %v677 = vrot.slane %v650, 1
          %v678 = vrot.slane %v651, 1
          %v679 = vsel %vm671, %v677, %v678
          %v680 = vrot.slane %v652, 1
          %v681 = vsel %vm671, %v678, %v680
          %v682 = vrot.slane %v653, 1
          %v683 = vrot.slane %v654, 1
          %v684 = vsel %vm671, %v682, %v683
          %v685 = vrot.slane %v655, 1
          %v686 = vsel %vm671, %v683, %v685
          %v687 = vrot.slane %v656, 1
          %v688 = vrot.slane %v657, 1
          %v689 = vsel %vm671, %v687, %v688
          %v690 = vrot.slane %v658, 1
          %v691 = vsel %vm671, %v688, %v690
          %v700 = vadd.f32 %v639, %v674
          %v701 = vadd.f32 %v640, %v676
          %v702 = vadd.f32 %v641, %v679
          %v703 = vadd.f32 %v642, %v681
          %v704 = vadd.f32 %v643, %v684
          %v705 = vadd.f32 %v644, %v686
          %v706 = vadd.f32 %v645, %v689
          %v707 = vadd.f32 %v646, %v691
          %v708 = vmul.f32 %v627, 0.40261996
          %v709 = vmul.f32 %v628, 0.40261996
          %v710 = vmul.f32 %v629, 0.40261996
          %v711 = vmul.f32 %v630, 0.40261996
          %v712 = vmul.f32 %v631, 0.40261996
          %v713 = vmul.f32 %v632, 0.40261996
          %v714 = vmul.f32 %v633, 0.40261996
          %v715 = vmul.f32 %v634, 0.40261996
          %v716 = vmul.f32 %v635, 0.40261996
          %v717 = vmul.f32 %v636, 0.40261996
          %v718 = vmul.f32 %v637, 0.40261996
          %v719 = vmul.f32 %v638, 0.40261996
          %vm732 = vcmask 1045504
          %v733 = vrot.slane %v708, 2
          %v734 = vrot.slane %v709, 2
          %v735 = vsel %vm732, %v733, %v734
          %v736 = vrot.slane %v710, 2
          %v737 = vsel %vm732, %v734, %v736
          %v738 = vrot.slane %v711, 2
          %v739 = vrot.slane %v712, 2
          %v740 = vsel %vm732, %v738, %v739
          %v741 = vrot.slane %v713, 2
          %v742 = vsel %vm732, %v739, %v741
          %v743 = vrot.slane %v714, 2
          %v744 = vrot.slane %v715, 2
          %v745 = vsel %vm732, %v743, %v744
          %v746 = vrot.slane %v716, 2
          %v747 = vsel %vm732, %v744, %v746
          %v748 = vrot.slane %v717, 2
          %v749 = vrot.slane %v718, 2
          %v750 = vsel %vm732, %v748, %v749
          %v751 = vrot.slane %v719, 2
          %v752 = vsel %vm732, %v749, %v751
          %v761 = vadd.f32 %v700, %v735
          %v762 = vadd.f32 %v701, %v737
          %v763 = vadd.f32 %v702, %v740
          %v764 = vadd.f32 %v703, %v742
          %v765 = vadd.f32 %v704, %v745
          %v766 = vadd.f32 %v705, %v747
          %v767 = vadd.f32 %v706, %v750
          %v768 = vadd.f32 %v707, %v752
          %vm769 = vcmask 1044480
          %v770 = vrot.slane %v647, 3
          %v771 = vrot.slane %v648, 3
          %v772 = vsel %vm769, %v770, %v771
          %v773 = vrot.slane %v649, 3
          %v774 = vsel %vm769, %v771, %v773
          %v775 = vrot.slane %v650, 3
          %v776 = vrot.slane %v651, 3
          %v777 = vsel %vm769, %v775, %v776
          %v778 = vrot.slane %v652, 3
          %v779 = vsel %vm769, %v776, %v778
          %v780 = vrot.slane %v653, 3
          %v781 = vrot.slane %v654, 3
          %v782 = vsel %vm769, %v780, %v781
          %v783 = vrot.slane %v655, 3
          %v784 = vsel %vm769, %v781, %v783
          %v785 = vrot.slane %v656, 3
          %v786 = vrot.slane %v657, 3
          %v787 = vsel %vm769, %v785, %v786
          %v788 = vrot.slane %v658, 3
          %v789 = vsel %vm769, %v786, %v788
          %v798 = vadd.f32 %v761, %v772
          %v799 = vadd.f32 %v762, %v774
          %v800 = vadd.f32 %v763, %v777
          %v801 = vadd.f32 %v764, %v779
          %v802 = vadd.f32 %v765, %v782
          %v803 = vadd.f32 %v766, %v784
          %v804 = vadd.f32 %v767, %v787
          %v805 = vadd.f32 %v768, %v789
          %v806 = vmul.f32 %v629, 0.054488685
          %v807 = vmul.f32 %v632, 0.054488685
          %v808 = vmul.f32 %v635, 0.054488685
          %v809 = vmul.f32 %v638, 0.054488685
          %vm822 = vcmask 1043456
          %v823 = vrot.slane %v639, 4
          %v824 = vrot.slane %v640, 4
          %v825 = vsel %vm822, %v823, %v824
          %v826 = vrot.slane %v806, 4
          %v827 = vsel %vm822, %v824, %v826
          %v828 = vrot.slane %v641, 4
          %v829 = vrot.slane %v642, 4
          %v830 = vsel %vm822, %v828, %v829
          %v831 = vrot.slane %v807, 4
          %v832 = vsel %vm822, %v829, %v831
          %v833 = vrot.slane %v643, 4
          %v834 = vrot.slane %v644, 4
          %v835 = vsel %vm822, %v833, %v834
          %v836 = vrot.slane %v808, 4
          %v837 = vsel %vm822, %v834, %v836
          %v838 = vrot.slane %v645, 4
          %v839 = vrot.slane %v646, 4
          %v840 = vsel %vm822, %v838, %v839
          %v841 = vrot.slane %v809, 4
          %v842 = vsel %vm822, %v839, %v841
          %v851 = vadd.f32 %v798, %v825
          %v852 = vadd.f32 %v799, %v827
          %v853 = vadd.f32 %v800, %v830
          %v854 = vadd.f32 %v801, %v832
          %v855 = vadd.f32 %v802, %v835
          %v856 = vadd.f32 %v803, %v837
          %v857 = vadd.f32 %v804, %v840
          %v858 = vadd.f32 %v805, %v842
          %vm859 = vcmask 130048
          %860 = vst.msk [vmem:[%s145] sm:$0xff] %vm859, %v851
          %861 = vst.msk [vmem:[%s145 + $0x8] sm:$0xff] %vm859, %v852
          %862 = vst.msk [vmem:[%s145 + $0x10] sm:$0xff] %vm859, %v853
          %863 = vst.msk [vmem:[%s145 + $0x18] sm:$0xff] %vm859, %v854
          %864 = vst.msk [vmem:[%s145 + $0x20] sm:$0xff] %vm859, %v855
          %865 = vst.msk [vmem:[%s145 + $0x28] sm:$0xff] %vm859, %v856
          %866 = vst.msk [vmem:[%s145 + $0x30] sm:$0xff] %vm859, %v857
          %867 = vst.msk [vmem:[%s145 + $0x38] sm:$0xff] %vm859, %v858
        $region36: #{original_gaussian_blur.1} parent=23 // pred_fallthru
          _
        %s868 = sand.u32 %s61, 1
        %s869 = scalar_lea.sflag [#allocation7], %s868
        %s870 = sand.u32 %s61, 1
        %s871 = smul.addr %s870, 64
        %s872 = scalar_lea.vmem [#allocation8], %s871
        // Predicated region
        $region37: #{original_gaussian_blur.1} parent=23 // pred_check
          %p873 = pneg %p71
        $region38: #{original_gaussian_blur.1} parent=23 // pred_check_branch
          %875 = sbr.rel (%p873) target = $region40
        $region39: #{original_gaussian_blur.1} parent=23 // pred_region
          %877 = vsyncadd %s869, 0
          %s878 = smul.addr %s27, 8
          %s879 = smul.addr %s878, 8
          %s880 = scalar_lea.hbm %s2, %s879
          %s881 = sshll.u32 %s872, 4
          %s882 = int_to_ptr.vmem [resolvable:$true] %s881
          %s883 = sshll.u32 %s880, 4
          %s884 = int_to_ptr.hbm [resolvable:$true] %s883
          %889 = dma.vmem_to_hbm [thread:$0]  %s882, 1024, %s884, %s869, 128, 128, 8
        $region40: #{original_gaussian_blur.1} parent=23 // pred_fallthru
          _
      $region24: #{original_gaussian_blur.1} parent=5 // pred_fallthru
        _
      %p890 = scmp.le.s32.totalorder 2, %s22
      // Predicated region
      $region41: #{original_gaussian_blur.1} parent=5 // pred_check
        %p891 = pneg %p890
      $region42: #{original_gaussian_blur.1} parent=5 // pred_check_branch
        %893 = sbr.rel (%p891) target = $region44
      $region43: #{original_gaussian_blur.1} parent=5 // pred_region
        %s894 = ssub.s32 %s22, 2
        // Predicated region
        $region45: #{original_gaussian_blur.1} parent=43 // pred_check
          %p895 = pneg %p77
        $region46: #{original_gaussian_blur.1} parent=43 // pred_check_branch
          %897 = sbr.rel (%p895) target = $region48
        $region47: #{original_gaussian_blur.1} parent=43 // pred_region
          %s898 = sand.u32 %s62, 1
          %s899 = scalar_lea.sflag [#allocation7], %s898
          %s900 = sand.u32 %s62, 1
          %s901 = smul.addr %s900, 64
          %s902 = scalar_lea.vmem [#allocation8], %s901
          %904 = dma.done %s899, 1024
        $region48: #{original_gaussian_blur.1} parent=43 // pred_fallthru
          _
      $region44: #{original_gaussian_blur.1} parent=5 // pred_fallthru
        _
    $region6: #{original_gaussian_blur.1} parent=1 // loop_footer
      %s26 = sadd.s32 1, %s22
    $region7: #{original_gaussian_blur.1} parent=1 // loop_footer_branch
      %21 = sbr.rel target = $region3
    $region8: #{original_gaussian_blur.1} parent=1 // loop_exit
      _
    %905 = vsyncpa [#allocation6], 1
    %s906 = scalar_lea.sflag [#allocation6], 1
    %907 = vsyncpa %s906, 1
    %908 = vsyncpa [#allocation7], 1
    %s909 = scalar_lea.sflag [#allocation7], 1
    %910 = vsyncpa %s909, 1

</llo_original>
